<compile_context>
chip_gen: v6e
topology: v6e:2x2x1
jax: 0.10.0
libtpu: 0.0.40
codegen_flags: <defaults>
</compile_context>

<pallas_src>
import jax
import jax.numpy as jnp
from jax.experimental import pallas as pl
from jax.experimental.pallas import tpu as pltpu

HIDDEN = 32
BN_EPS = 1e-5
LANE = 128


def _round_up(v, m):
    return (v + m - 1) // m * m


def _choose_agg_tiles(n):
    """Row (sublane) / reduction (lane) tiles for the aggregation matmul."""
    # Reduction tile: lane axis of adj, multiple of 128, capped at 512.
    tk = _round_up(min(max(n, 1), 512), LANE)
    # Row tile: multiple of 8.  Aim for >= 2 row tiles so the "parallel" axis
    # can shard across v7x's two TensorCores; cap at 1024 so the adj tile
    # stays ~1 MiB double-buffered on every generation.
    if n >= 16:
        tm = _round_up(-(-n // 2), 8)
    else:
        tm = _round_up(max(n, 1), 8)
    tm = min(tm, 1024)
    return tm, tk


# ---------------------------------------------------------------------------
# Kernel 1: tiled neighbourhood aggregation   agg = x + adj @ x   (eps = 0)
#   adj tiled (TM, TK); x fully VMEM-resident; accumulate straight into out.
# ---------------------------------------------------------------------------
def _make_aggregate_kernel(tm, tk):
    def kernel(adj_ref, x_ref, out_ref):
        i = pl.program_id(0)
        k = pl.program_id(1)

        @pl.when(k == 0)
        def _():
            # (1 + eps) * x_i self term, eps = 0: initialise with own features.
            r0 = pl.multiple_of(i * tm, tm)
            out_ref[...] = x_ref[pl.ds(r0, tm), :].astype(jnp.float32)

        c0 = pl.multiple_of(k * tk, tk)
        out_ref[...] += jnp.dot(adj_ref[...], x_ref[pl.ds(c0, tk), :],
                                preferred_element_type=jnp.float32)

    return kernel


def aggregate(adj_bf16, x_bf16, tm, tk):
    n_rows, n_cols = adj_bf16.shape
    x_rows, f_pad = x_bf16.shape
    grid = (n_rows // tm, n_cols // tk)

    cost = pl.CostEstimate(
        flops=2 * n_rows * n_cols * f_pad,
        transcendentals=0,
        bytes_accessed=n_rows * n_cols * 2 + x_rows * f_pad * 2 + n_rows * f_pad * 4,
    )
    # adj tile + out tile double-buffered, x counted twice to be safe, + slack.
    need = 2 * (tm * tk * 2) + 2 * (tm * f_pad * 4) + 2 * (x_rows * f_pad * 2) + (4 << 20)
    vmem_limit = max(32 << 20, min(need, 96 << 20))

    return pl.pallas_call(
        _make_aggregate_kernel(tm, tk),
        out_shape=jax.ShapeDtypeStruct((n_rows, f_pad), jnp.float32),
        grid_spec=pltpu.PrefetchScalarGridSpec(
            num_scalar_prefetch=0,
            grid=grid,
            in_specs=[
                pl.BlockSpec((tm, tk), lambda i, k: (i, k)),
                pl.BlockSpec((x_rows, f_pad), lambda i, k: (0, 0)),  # resident
            ],
            out_specs=pl.BlockSpec((tm, f_pad), lambda i, k: (i, 0)),
        ),
        compiler_params=pltpu.CompilerParams(
            dimension_semantics=("parallel", "arbitrary"),
            vmem_limit_bytes=vmem_limit,
        ),
        cost_estimate=cost,
    )(adj_bf16, x_bf16)


# ---------------------------------------------------------------------------
# Kernel 2/3/4: row-tiled MLP stages.
#   Stage kernel = [optional BN(prev stats)+ReLU] -> Linear -> [optional stats]
#   BN batch statistics are accumulated over the REAL N rows only (padded rows
#   masked), so they stay global exactly as in the PyTorch reference.
# ---------------------------------------------------------------------------
def _make_mlp_stage_kernel(n_real, tr, pre_bn, collect_stats):
    inv_n = 1.0 / float(n_real)

    def kernel(*refs):
        refs = list(refs)
        h_ref = refs.pop(0)
        if pre_bn:
            stats_in_ref = refs.pop(0)
            g_ref = refs.pop(0)
            be_ref = refs.pop(0)
        w_ref = refs.pop(0)
        b_ref = refs.pop(0)
        out_ref = refs.pop(0)
        stats_out_ref = refs.pop(0) if collect_stats else None

        i = pl.program_id(0)
        h = h_ref[...]
        if pre_bn:
            # One-pass BN folded into a single scale/shift (training-mode,
            # biased variance, eps=1e-5), then ReLU.
            stats = stats_in_ref[...]
            mean = stats[0:1, :] * inv_n
            var = jnp.maximum(stats[1:2, :] * inv_n - mean * mean, 0.0)
            scale = g_ref[...] * jax.lax.rsqrt(var + BN_EPS)
            shift = be_ref[...] - mean * scale
            h = jnp.maximum(h * scale + shift, 0.0)

        h = jnp.dot(h, w_ref[...], preferred_element_type=jnp.float32) + b_ref[...]
        out_ref[...] = h.astype(out_ref.dtype)

        if collect_stats:
            rows = jax.lax.broadcasted_iota(jnp.int32, (tr, 1), 0) + i * tr
            hm = jnp.where(rows < n_real, h, 0.0)
            tile_stats = jnp.concatenate(
                [jnp.sum(hm, axis=0, keepdims=True),
                 jnp.sum(hm * hm, axis=0, keepdims=True)], axis=0)

            @pl.when(i == 0)
            def _():
                stats_out_ref[...] = jnp.zeros_like(stats_out_ref)

            stats_out_ref[...] += tile_stats

    return kernel


def _mlp_stage(h, param_ops, *, n_real, tr, pre_bn, collect_stats, out_cols):
    n_pad, in_cols = h.shape
    grid = (n_pad // tr,)

    in_specs = [pl.BlockSpec((tr, in_cols), lambda i: (i, 0))]
    for p in param_ops:
        shape = tuple(p.shape)
        in_specs.append(pl.BlockSpec(shape, lambda i, _nd=len(shape): (0,) * _nd))

    if collect_stats:
        out_shape = (jax.ShapeDtypeStruct((n_pad, out_cols), jnp.float32),
                     jax.ShapeDtypeStruct((2, HIDDEN), jnp.float32))
        out_specs = (pl.BlockSpec((tr, out_cols), lambda i: (i, 0)),
                     pl.BlockSpec((2, HIDDEN), lambda i: (0, 0)))
        dims = ("arbitrary",)     # stats block resident across the row axis
    else:
        out_shape = jax.ShapeDtypeStruct((n_pad, out_cols), jnp.float32)
        out_specs = pl.BlockSpec((tr, out_cols), lambda i: (i, 0))
        dims = ("parallel",)

    return pl.pallas_call(
        _make_mlp_stage_kernel(n_real, tr, pre_bn, collect_stats),
        out_shape=out_shape,
        grid=grid,
        in_specs=in_specs,
        out_specs=out_specs,
        compiler_params=pltpu.CompilerParams(dimension_semantics=dims),
    )(h, *param_ops)


# ---------------------------------------------------------------------------
# Forward wrapper (plain-JAX glue around the Pallas kernels)
# ---------------------------------------------------------------------------
def gin_debug_forward(x, edge_index, edge_attr, params, L, A, dim_target):
    """x: [N, K, F] float32, edge_index: [2, E] int32, edge_attr unused."""
    del edge_attr  # unused in the reference forward
    assert L * A == 1, "reference reshape (N, L, A, T) requires L*A == 1"

    x0 = x[:, 0, :].astype(jnp.float32)          # x = x[:, 0, :]
    N, F = x0.shape
    f_pad = _round_up(F, LANE)                   # lane-dense feature dim

    tm, tk = _choose_agg_tiles(N)
    n_rows = _round_up(N, tm)                    # adj row padding (sublane tile)
    n_cols = _round_up(N, tk)                    # adj col padding (lane tile)
    x_rows = max(n_rows, n_cols)                 # x serves both axes

    # Padded node features, bf16 for the aggregation matmul (VMEM-resident RHS).
    x_bf16 = jnp.zeros((x_rows, f_pad), jnp.bfloat16).at[:N, :F].set(
        x0.astype(jnp.bfloat16))

    # Dense adjacency built DIRECTLY in bf16: adj[i, j] = #edges j -> i.
    # Small integer counts (<= 256) are exact in bf16. No diagonal add — the
    # self term is folded into the aggregation kernel.
    src = edge_index[0]
    dst = edge_index[1]
    adj_bf16 = jnp.zeros((n_rows, n_cols), jnp.bfloat16).at[dst, src].add(
        jnp.ones(src.shape, jnp.bfloat16))

    # --- Pallas kernel 1: tiled neighbourhood aggregation --------------------
    agg = aggregate(adj_bf16, x_bf16, tm, tk)    # [n_rows, f_pad] f32

    # --- Pallas kernels 2-4: row-tiled MLP (+BN, ReLU) + readout --------------
    (w1, b1, g1, be1, w2, b2, g2, be2, w3, b3) = params
    t_pad = _round_up(dim_target, LANE)
    w1p = jnp.zeros((f_pad, HIDDEN), jnp.float32).at[:F].set(w1)
    w3p = jnp.zeros((HIDDEN, t_pad), jnp.float32).at[:, :dim_target].set(w3)
    b3p = jnp.zeros((1, t_pad), jnp.float32).at[:, :dim_target].set(b3)

    tr = min(512, _round_up(N, 8))               # MLP row tile
    n_mlp = _round_up(N, tr)
    if n_mlp <= agg.shape[0]:
        h0 = agg[:n_mlp]
    else:
        h0 = jnp.pad(agg, ((0, n_mlp - agg.shape[0]), (0, 0)))

    # Pass 1: h1 = agg @ W1 + b1, plus global (sum, sumsq) over real rows.
    h1, stats1 = _mlp_stage(h0, [w1p, b1], n_real=N, tr=tr,
                            pre_bn=False, collect_stats=True, out_cols=HIDDEN)
    # Pass 2: h2 = ReLU(BN1(h1)) @ W2 + b2, plus stats of h2.
    h2, stats2 = _mlp_stage(h1, [stats1, g1, be1, w2, b2], n_real=N, tr=tr,
                            pre_bn=True, collect_stats=True, out_cols=HIDDEN)
    # Pass 3: out = ReLU(BN2(h2)) @ W3 + b3  (lane-padded readout slab).
    out = _mlp_stage(h2, [stats2, g2, be2, w3p, b3p], n_real=N, tr=tr,
                     pre_bn=True, collect_stats=False, out_cols=t_pad)

    out = out[:N, :dim_target]

    # torch.reshape(out, (N, L, A, dim_target)) — valid only when L * A == 1.
    return out.reshape(N, L, A, dim_target)


# ---------------------------------------------------------------------------
# Pure-JAX reference (for correctness checking only)
# ---------------------------------------------------------------------------
def _reference_forward(x, edge_index, params, L, A, dim_target):
    (w1, b1, g1, be1, w2, b2, g2, be2, w3, b3) = params
    x0 = x[:, 0, :].astype(jnp.float32)
    n = x0.shape[0]
    src, dst = edge_index[0], edge_index[1]
    adj = jnp.zeros((n, n), jnp.float32).at[dst, src].add(1.0)
    agg = x0 + adj @ x0

    def bn_relu(h, g, b):
        mean = jnp.mean(h, axis=0, keepdims=True)
        var = jnp.mean((h - mean) ** 2, axis=0, keepdims=True)
        return jnp.maximum(g * (h - mean) * jax.lax.rsqrt(var + BN_EPS) + b, 0.0)

    h = bn_relu(agg @ w1 + b1, g1, be1)
    h = bn_relu(h @ w2 + b2, g2, be2)
    out = h @ w3 + b3
    return out.reshape(n, L, A, dim_target)


if __name__ == "__main__":
    key = jax.random.PRNGKey(0)
    keys = jax.random.split(key, 10)

    # Small shapes consistent with the module's forward:
    N, K, F = 16, 3, 4          # x: [N, K, dim_node_features]; forward takes x[:, 0, :]
    E = 32                      # number of edges
    dim_edge_features = 4
    dim_target = 8
    L, A = 1, 1                 # reshape (N, L, A, dim_target) requires L*A == 1

    x = jax.random.normal(keys[0], (N, K, F), jnp.float32)
    src = jax.random.randint(keys[1], (E,), 0, N, dtype=jnp.int32)
    dst = jax.random.randint(keys[2], (E,), 0, N, dtype=jnp.int32)
    edge_index = jnp.stack([src, dst], axis=0)
    edge_attr = jax.random.normal(keys[3], (E, dim_edge_features), jnp.float32)

    # Deterministic synthetic parameters (shapes from __init__):
    params = (
        0.1 * jax.random.normal(keys[4], (F, HIDDEN), jnp.float32),       # Linear1 W (F -> 32)
        0.1 * jax.random.normal(keys[5], (1, HIDDEN), jnp.float32),       # Linear1 b
        jnp.ones((1, HIDDEN), jnp.float32),                               # BN1 gamma (PyTorch init)
        jnp.zeros((1, HIDDEN), jnp.float32),                              # BN1 beta
        0.1 * jax.random.normal(keys[6], (HIDDEN, HIDDEN), jnp.float32),  # Linear2 W (32 -> 32)
        0.1 * jax.random.normal(keys[7], (1, HIDDEN), jnp.float32),       # Linear2 b
        jnp.ones((1, HIDDEN), jnp.float32),                               # BN2 gamma
        jnp.zeros((1, HIDDEN), jnp.float32),                              # BN2 beta
        0.1 * jax.random.normal(keys[8], (HIDDEN, dim_target), jnp.float32),  # readout W (32 -> T)
        0.1 * jax.random.normal(keys[9], (1, dim_target), jnp.float32),       # readout b
    )

    out = gin_debug_forward(x, edge_index, edge_attr, params, L, A, dim_target)
    out = jax.block_until_ready(out)
    assert out.shape == (N, L, A, dim_target), out.shape
    assert jnp.all(jnp.isfinite(out))

    ref = _reference_forward(x, edge_index, params, L, A, dim_target)
    ref = jax.block_until_ready(ref)
    # bf16 aggregation inputs -> ~3 significant digits; loose tolerance.
    assert jnp.allclose(out, ref, rtol=5e-2, atol=5e-2), (
        float(jnp.max(jnp.abs(out - ref))))

    print("KERNEL_OK")
</pallas_src>

<mosaic_0001>
module attributes {stable_mosaic.version = 11 : i64} {
  func.func @kernel(%arg0: i32, %arg1: i32, %arg2: memref<8x128xbf16, #tpu.memory_space<vmem>>, %arg3: memref<128x128xbf16, #tpu.memory_space<vmem>>, %arg4: memref<8x128xf32, #tpu.memory_space<vmem>>) attributes {dimension_semantics = [#tpu.dimension_semantics<parallel>, #tpu.dimension_semantics<arbitrary>], iteration_bounds = array<i64: 2, 1>, scalar_prefetch = 0 : i64, scratch_operands = 0 : i64, tpu.core_type = #tpu.core_type<tc>, window_params = [{transform_indices = @transform_0, window_bounds = array<i64: 8, 128>}, {pipeline_mode = #tpu.pipeline_mode<synchronous>, transform_indices = @transform_1, window_bounds = array<i64: 128, 128>}, {transform_indices = @transform_2, window_bounds = array<i64: 8, 128>}]} {
    %c0_i32 = arith.constant 0 : i32
    %0 = arith.cmpi eq, %arg1, %c0_i32 : i32
    %1 = arith.extui %0 : i1 to i32
    %c0_i32_0 = arith.constant 0 : i32
    %2 = arith.cmpi ne, %1, %c0_i32_0 : i32
    scf.if %2 {
      %c8_i32 = arith.constant 8 : i32
      %12 = arith.muli %arg0, %c8_i32 : i32
      %13 = tpu.assume_multiple %12, 8 : i32
      %14 = arith.index_cast %13 : i32 to index
      %c0_7 = arith.constant 0 : index
      %15 = vector.load %arg3[%14, %c0_7] : memref<128x128xbf16, #tpu.memory_space<vmem>>, vector<8x128xbf16>
      %16 = arith.extf %15 : vector<8x128xbf16> to vector<8x128xf32>
      %c0_8 = arith.constant 0 : index
      %c0_9 = arith.constant 0 : index
      %17 = vector.load %arg4[%c0_8, %c0_9] : memref<8x128xf32, #tpu.memory_space<vmem>>, vector<8x128xf32>
      tpu.vector_store %arg4[%c0_8, %c0_9], %16 {strides = array<i32>} : memref<8x128xf32, #tpu.memory_space<vmem>>, vector<8x128xf32>,
    } else {
    }
    %c128_i32 = arith.constant 128 : i32
    %3 = arith.muli %arg1, %c128_i32 : i32
    %4 = tpu.assume_multiple %3, 128 : i32
    %c0 = arith.constant 0 : index
    %c0_1 = arith.constant 0 : index
    %5 = vector.load %arg4[%c0, %c0_1] : memref<8x128xf32, #tpu.memory_space<vmem>>, vector<8x128xf32>
    %c0_2 = arith.constant 0 : index
    %c0_3 = arith.constant 0 : index
    %6 = vector.load %arg2[%c0_2, %c0_3] : memref<8x128xbf16, #tpu.memory_space<vmem>>, vector<8x128xbf16>
    %7 = arith.index_cast %4 : i32 to index
    %c0_4 = arith.constant 0 : index
    %8 = vector.load %arg3[%7, %c0_4] : memref<128x128xbf16, #tpu.memory_space<vmem>>, vector<128x128xbf16>
    %cst = arith.constant dense<0.000000e+00> : vector<8x128xf32>
    %9 = tpu.matmul %6, %8, %cst {dimension_numbers = #tpu.dot_dimension_numbers<[1], [0], [0], [1], [0, 0, 1, 1], [], []>} : vector<8x128xbf16>, vector<128x128xbf16>, vector<8x128xf32> -> vector<8x128xf32>
    %10 = arith.addf %5, %9 : vector<8x128xf32>
    %c0_5 = arith.constant 0 : index
    %c0_6 = arith.constant 0 : index
    %11 = vector.load %arg4[%c0_5, %c0_6] : memref<8x128xf32, #tpu.memory_space<vmem>>, vector<8x128xf32>
    tpu.vector_store %arg4[%c0_5, %c0_6], %10 {strides = array<i32>} : memref<8x128xf32, #tpu.memory_space<vmem>>, vector<8x128xf32>,
    return
  }
  func.func @transform_0(%arg0: i32, %arg1: i32) -> (i32, i32) {
    %c0_i32 = arith.constant 0 : i32
    return %arg0, %arg1 : i32, i32
  }
  func.func @transform_1(%arg0: i32, %arg1: i32) -> (i32, i32) {
    %c0_i32 = arith.constant 0 : i32
    %c0_i32_0 = arith.constant 0 : i32
    %c0_i32_1 = arith.constant 0 : i32
    return %c0_i32, %c0_i32_0 : i32, i32
  }
  func.func @transform_2(%arg0: i32, %arg1: i32) -> (i32, i32) {
    %c0_i32 = arith.constant 0 : i32
    %c0_i32_0 = arith.constant 0 : i32
    return %arg0, %c0_i32 : i32, i32
  }
}

</mosaic_0001>

<llo_original>
// kernel: tpu_custom_call.1
$region0: #{tpu_custom_call.1}
  #allocation0 [shape = 'u32[]', space=smem, size = 0x4, offset = 0x4, fixed_abs, tag = 'smem constant byte address 0x4 - core index']
  #allocation1 [shape = 'u32[144,128]{1,0:T(1,128)}', space=vmem, size = 0x12000, scoped, tag = 'internal scratch']
  %s0 = inlined_call_operand.hbm [shape: bf16[16,128], index: 0, kind: input, shape index: {}]
  %s1 = inlined_call_operand.hbm [shape: bf16[128,128], index: 1, kind: input, shape index: {}]
  %s2 = inlined_call_operand.hbm [shape: f32[16,128], index: 2, kind: output, shape index: {}]
  %s3 = sld [smem:[#allocation0]]
  $region53: #{tpu_custom_call.1} parent=0
    _
  %s5 = ssub.s32 1, %s3
  %s6 = scalar_select 0, %s5, %s3
  $region1: #{tpu_custom_call.1} parent=0
    #allocation2 [shape = 'u8[4096]{0}', space=vmem, size = 0x1000, scoped, tag = 'input window, operand 0']
    #allocation3 [shape = 's32[2]{0}', space=sflag, size = 0x8, scoped, tag = 'scoped memory for tpu_custom_call.1']
    #allocation4 [shape = 's32[2]{0}', space=sflag, size = 0x8, scoped, tag = 'scoped memory for tpu_custom_call.1']
    #allocation5 [shape = 'u8[32768]{0}', space=vmem, size = 0x8000, scoped, tag = 'input window, operand 1, single buffered']
    #allocation6 [shape = 's32[1]{0}', space=sflag, size = 0x4, scoped, tag = 'scoped memory for tpu_custom_call.1']
    #allocation7 [shape = 'u8[8192]{0}', space=vmem, size = 0x2000, scoped, tag = 'output window, operand 0']
    %7 = vsyncpa [#allocation3], 0
    %s8 = scalar_lea.sflag [#allocation3], 1
    %9 = vsyncpa %s8, 0
    %10 = vsyncpa [#allocation6], 0
    %11 = vsyncpa [#allocation4], 0
    %s12 = scalar_lea.sflag [#allocation4], 1
    %13 = vsyncpa %s12, 0
    loop: start=0, step=1, limit=4
    $region2: #{tpu_custom_call.1} parent=1 // loop_pre_header
      _
    $region3: #{tpu_custom_call.1} parent=1 // loop_header
      %s15 = sphi 0, %s19
      %p16 = scmp.ge.s32.totalorder %s15, 4
      %s22 = sphi 0, %s34
      %s23 = sphi 0, %s30
      %s24 = sphi 0, %s22
      %s25 = sphi 0, %s23
      %s26 = sphi 0, %s24
      %s27 = sphi 0, %s25
      %s39 = sphi 0, %s41
      %s42 = sphi 0, %s39
      %s43 = sphi 0, %s42
      %s59 = sphi 0, %s43
      %s63 = sphi 0, %s63
      %s65 = sphi 0, %s63
      %s66 = sphi 0, %s65
      %s80 = sphi 0, %s66
      %s86 = sphi 0, %s88
      %s89 = sphi 0, %s86
      %s90 = sphi 0, %s89
      %s106 = sphi 0, %s90
    $region4: #{tpu_custom_call.1} parent=1 // loop_header_branch
      %18 = sbr.rel (%p16) target = $region8
    $region5: #{tpu_custom_call.1} parent=1 // loop_body
      %s20 = ssub.s32 %s15, 1
      %s21 = ssub.s32 %s15, 2
      %s28 = sadd.s32 1, %s23
      %p29 = scmp.ge.s32.totalorder %s28, 1
      %s30 = scalar_select %p29, 0, %s28
      %s31 = sadd.s32 1, %s22
      %s32 = scalar_select %p29, %s31, %s22
      %p33 = scmp.ge.s32.totalorder %s32, 2
      %s34 = scalar_select %p33, 0, %s32
      %s35 = ssub.s32 %s22, %s34
      %s36 = ssub.s32 %s23, %s30
      %s37 = sor.u32 %s35, %s36
      %p38 = scmp.eq.s32.totalorder %s37, 0
      %s40 = sadd.s32 %s39, 1
      %s41 = scalar_select %p38, %s39, %s40
      %p44 = pneg %p38
      %p45 = scmp.eq.s32.totalorder %s15, 1
      %p46 = por %p44, %p45
      %p47 = scmp.ne.s32.totalorder %s39, %s42
      %p48 = scmp.eq.s32.totalorder %s15, 0
      %p49 = por %p47, %p48
      %p50 = scmp.ne.s32.totalorder %s39, %s42
      %p51 = scmp.eq.s32.totalorder %s20, 1
      %p52 = por %p50, %p51
      %p53 = scmp.ne.s32.totalorder %s42, %s43
      %p54 = scmp.eq.s32.totalorder %s20, 0
      %p55 = por %p53, %p54
      %p56 = scmp.ne.s32.totalorder %s42, %s43
      %p57 = scmp.eq.s32.totalorder %s21, 1
      %p58 = por %p56, %p57
      %p60 = scmp.ne.s32.totalorder %s43, %s59
      %p61 = scmp.eq.s32.totalorder %s21, 0
      %p62 = por %p60, %p61
      %s64 = sadd.s32 %s63, 1
      %p67 = scmp.eq.s32.totalorder %s15, 1
      %p68 = scmp.ne.s32.totalorder %s63, %s65
      %p69 = scmp.eq.s32.totalorder %s15, 0
      %p70 = por %p68, %p69
      %p71 = scmp.ne.s32.totalorder %s63, %s65
      %p72 = scmp.eq.s32.totalorder %s20, 1
      %p73 = por %p71, %p72
      %p74 = scmp.ne.s32.totalorder %s65, %s66
      %p75 = scmp.eq.s32.totalorder %s20, 0
      %p76 = por %p74, %p75
      %p77 = scmp.ne.s32.totalorder %s65, %s66
      %p78 = scmp.eq.s32.totalorder %s21, 1
      %p79 = por %p77, %p78
      %p81 = scmp.ne.s32.totalorder %s66, %s80
      %p82 = scmp.eq.s32.totalorder %s21, 0
      %p83 = por %p81, %p82
      %s84 = ssub.s32 %s22, %s34
      %p85 = scmp.eq.s32.totalorder %s84, 0
      %s87 = sadd.s32 %s86, 1
      %s88 = scalar_select %p85, %s86, %s87
      %p91 = pneg %p85
      %p92 = scmp.eq.s32.totalorder %s15, 1
      %p93 = por %p91, %p92
      %p94 = scmp.ne.s32.totalorder %s86, %s89
      %p95 = scmp.eq.s32.totalorder %s15, 0
      %p96 = por %p94, %p95
      %p97 = scmp.ne.s32.totalorder %s86, %s89
      %p98 = scmp.eq.s32.totalorder %s20, 1
      %p99 = por %p97, %p98
      %p100 = scmp.ne.s32.totalorder %s89, %s90
      %p101 = scmp.eq.s32.totalorder %s20, 0
      %p102 = por %p100, %p101
      %p103 = scmp.ne.s32.totalorder %s89, %s90
      %p104 = scmp.eq.s32.totalorder %s21, 1
      %p105 = por %p103, %p104
      %p107 = scmp.ne.s32.totalorder %s90, %s106
      %p108 = scmp.eq.s32.totalorder %s21, 0
      %p109 = por %p107, %p108
      %p110 = scmp.le.s32.totalorder 1, %s15
      %p111 = scmp.lt.s32.totalorder %s15, 3
      %p112 = pnand %p110, %p111
      %p113 = pneg %p112
      // Predicated region
      $region9: #{tpu_custom_call.1} parent=5 // pred_check
        _
      $region10: #{tpu_custom_call.1} parent=5 // pred_check_branch
        %115 = sbr.rel (%p112) target = $region12
      $region11: #{tpu_custom_call.1} parent=5 // pred_region
        %s116 = ssub.s32 %s15, 1
        // Predicated region
        $region13: #{tpu_custom_call.1} parent=11 // pred_check
          %p117 = pneg %p76
        $region14: #{tpu_custom_call.1} parent=11 // pred_check_branch
          %119 = sbr.rel (%p117) target = $region16
        $region15: #{tpu_custom_call.1} parent=11 // pred_region
          %s121 = ssub.s32 1024, 1024
          %122 = vsyncadd [#allocation6], %s121
          %s123 = sshll.u32 [#allocation5], 4
          %s124 = int_to_ptr.vmem [resolvable:$true] %s123
          %129 = dma.hbm_to_vmem [thread:$0]  %s1, 1024, %s124, [#allocation6], 64, 64, 4
        $region16: #{tpu_custom_call.1} parent=11 // pred_fallthru
          _
      $region12: #{tpu_custom_call.1} parent=5 // pred_fallthru
        _
      %p130 = scmp.lt.s32.totalorder %s15, 2
      // Predicated region
      $region17: #{tpu_custom_call.1} parent=5 // pred_check
        %p131 = pneg %p130
      $region18: #{tpu_custom_call.1} parent=5 // pred_check_branch
        %133 = sbr.rel (%p131) target = $region20
      $region19: #{tpu_custom_call.1} parent=5 // pred_region
        // Predicated region
        $region21: #{tpu_custom_call.1} parent=19 // pred_check
          %p134 = pneg %p49
        $region22: #{tpu_custom_call.1} parent=19 // pred_check_branch
          %136 = sbr.rel (%p134) target = $region24
        $region23: #{tpu_custom_call.1} parent=19 // pred_region
          %s137 = sand.u32 %s39, 1
          %s138 = scalar_lea.sflag [#allocation3], %s137
          %s139 = sand.u32 %s39, 1
          %s140 = smul.addr %s139, 4
          %s141 = scalar_lea.vmem [#allocation2], %s140
          %s143 = ssub.s32 64, 64
          %144 = vsyncadd %s138, %s143
          %s145 = sadd.s32 %s23, %s22
          %s146 = smul.addr %s145, 64
          %s147 = scalar_lea.hbm %s0, %s146
          %s149 = sshll.u32 %s141, 4
          %s150 = int_to_ptr.vmem [resolvable:$true] %s149
          %152 = dma.hbm_to_vmem [thread:$0]  %s147, 64, %s150, %s138
        $region24: #{tpu_custom_call.1} parent=19 // pred_fallthru
          _
      $region20: #{tpu_custom_call.1} parent=5 // pred_fallthru
        _
      %p153 = scmp.le.s32.totalorder 1, %s15
      %p154 = scmp.lt.s32.totalorder %s15, 3
      %p155 = pnand %p153, %p154
      %p156 = pneg %p155
      // Predicated region
      $region25: #{tpu_custom_call.1} parent=5 // pred_check
        _
      $region26: #{tpu_custom_call.1} parent=5 // pred_check_branch
        %158 = sbr.rel (%p155) target = $region28
      $region27: #{tpu_custom_call.1} parent=5 // pred_region
        %s159 = ssub.s32 %s15, 1
        %s160 = sand.u32 %s42, 1
        %s161 = scalar_lea.sflag [#allocation3], %s160
        %s162 = sand.u32 %s42, 1
        %s163 = smul.addr %s162, 4
        %s164 = scalar_lea.vmem [#allocation2], %s163
        // Predicated region
        $region29: #{tpu_custom_call.1} parent=27 // pred_check
          %p165 = pneg %p55
        $region30: #{tpu_custom_call.1} parent=27 // pred_check_branch
          %167 = sbr.rel (%p165) target = $region32
        $region31: #{tpu_custom_call.1} parent=27 // pred_region
          %168 = dma.done %s161, 64
        $region32: #{tpu_custom_call.1} parent=27 // pred_fallthru
          _
        // Predicated region
        $region33: #{tpu_custom_call.1} parent=27 // pred_check
          %p169 = pneg %p76
        $region34: #{tpu_custom_call.1} parent=27 // pred_check_branch
          %171 = sbr.rel (%p169) target = $region36
        $region35: #{tpu_custom_call.1} parent=27 // pred_region
          %172 = dma.done [#allocation6], 1024
        $region36: #{tpu_custom_call.1} parent=27 // pred_fallthru
          _
        %s173 = sand.u32 %s42, 1
        %s174 = scalar_lea.sflag [#allocation3], %s173
        %s175 = sand.u32 %s42, 1
        %s176 = smul.addr %s175, 4
        %s177 = scalar_lea.vmem [#allocation2], %s176
        %p178 = pneg %p55
        %p179 = pneg %p52
        %p180 = pneg %p76
        %p181 = pneg %p73
        %p182 = pneg %p102
        %p183 = pneg %p99
        %s184 = sand.u32 %s89, 1
        %s185 = scalar_lea.sflag [#allocation4], %s184
        %s186 = sand.u32 %s89, 1
        %s187 = smul.addr %s186, 8
        %s188 = scalar_lea.vmem [#allocation7], %s187
        %p190 = scmp.eq.s32.totalorder %s25, 0
        // Predicated region
        $region37: #{tpu_custom_call.1} parent=27 // pred_check
          %p191 = pneg %p190
        $region38: #{tpu_custom_call.1} parent=27 // pred_check_branch
          %193 = sbr.rel (%p191) target = $region40
        $region39: #{tpu_custom_call.1} parent=27 // pred_region
          %s194 = smul.u32 %s24, 8
          %s195 = sshra.s32 %s194, 3
          %s196 = sand.u32 %s194, 7
          %s197 = smul.addr %s195, 4
          %s198 = scalar_lea.vmem [#allocation5], %s197
          %v199 = vld [vmem:[%s198] sm:$0xf]
          %v200 = vunpack.c.l.bf16 %v199
          %201 = vst [vmem:[%s188] sm:$0xff] %v200
        $region40: #{tpu_custom_call.1} parent=27 // pred_fallthru
          _
        %s202 = smul.u32 %s25, 128
        %v203 = vld [vmem:[%s188] sm:$0xff]
        %v204 = vld [vmem:[%s164] sm:$0xf]
        %s205 = sshra.s32 %s202, 3
        %s206 = sand.u32 %s202, 7
        %s207 = smul.addr %s205, 4
        %s208 = scalar_lea.vmem [#allocation5], %s207
        %v209 = vld [vmem:[%s208] sm:$0xf]
        %v210 = vld [vmem:[%s208 + $0x4] sm:$0xf]
        %v211 = vld [vmem:[%s208 + $0x8] sm:$0xf]
        %v212 = vld [vmem:[%s208 + $0xc] sm:$0xf]
        %v213 = vld [vmem:[%s208 + $0x10] sm:$0xf]
        %v214 = vld [vmem:[%s208 + $0x14] sm:$0xf]
        %v215 = vld [vmem:[%s208 + $0x18] sm:$0xf]
        %v216 = vld [vmem:[%s208 + $0x1c] sm:$0xf]
        %v217 = vld [vmem:[%s208 + $0x20] sm:$0xf]
        %v218 = vld [vmem:[%s208 + $0x24] sm:$0xf]
        %v219 = vld [vmem:[%s208 + $0x28] sm:$0xf]
        %v220 = vld [vmem:[%s208 + $0x2c] sm:$0xf]
        %v221 = vld [vmem:[%s208 + $0x30] sm:$0xf]
        %v222 = vld [vmem:[%s208 + $0x34] sm:$0xf]
        %v223 = vld [vmem:[%s208 + $0x38] sm:$0xf]
        %v224 = vld [vmem:[%s208 + $0x3c] sm:$0xf]
        %v241 = vunpack.c.l.b16 %v209
        %v242 = vunpack.c.l.b16 %v210
        %v243 = vunpack.c.l.b16 %v211
        %v244 = vunpack.c.l.b16 %v212
        %v245 = vunpack.c.l.b16 %v213
        %v246 = vunpack.c.l.b16 %v214
        %v247 = vunpack.c.l.b16 %v215
        %v248 = vunpack.c.l.b16 %v216
        %v249 = vunpack.c.l.b16 %v217
        %v250 = vunpack.c.l.b16 %v218
        %v251 = vunpack.c.l.b16 %v219
        %v252 = vunpack.c.l.b16 %v220
        %v253 = vunpack.c.l.b16 %v221
        %v254 = vunpack.c.l.b16 %v222
        %v255 = vunpack.c.l.b16 %v223
        %v256 = vunpack.c.l.b16 %v224
        %v257 = vpack.c.b16 %v242, %v241
        %v258 = vpack.c.b16 %v244, %v243
        %v259 = vpack.c.b16 %v246, %v245
        %v260 = vpack.c.b16 %v248, %v247
        %v261 = vpack.c.b16 %v250, %v249
        %v262 = vpack.c.b16 %v252, %v251
        %v263 = vpack.c.b16 %v254, %v253
        %v264 = vpack.c.b16 %v256, %v255
        %273 = vmatprep.subr.bf16.mxu0 0
        %274 = vmatpush1.bf16.msra.mxu0 %v264
        %275 = vmatprep.subr.bf16.mxu0 0
        %276 = vmatpush1.bf16.msra.mxu0 %v263
        %277 = vmatprep.subr.bf16.mxu0 0
        %278 = vmatpush1.bf16.msra.mxu0 %v262
        %279 = vmatprep.subr.bf16.mxu0 0
        %280 = vmatpush1.bf16.msra.mxu0 %v261
        %281 = vmatprep.subr.bf16.mxu0 0
        %282 = vmatpush1.bf16.msra.mxu0 %v260
        %283 = vmatprep.subr.bf16.mxu0 0
        %284 = vmatpush1.bf16.msra.mxu0 %v259
        %285 = vmatprep.subr.bf16.mxu0 0
        %286 = vmatpush1.bf16.msra.mxu0 %v258
        %287 = vmatprep.subr.bf16.mxu0 0
        %288 = vmatpush1.bf16.msra.mxu0 %v257
        %289 = vmatprep.subr.bf16.mxu0 0
        %290 = vmatpush2.bf16.msra.mxu0 0
        %291 = vmatprep.subr.bf16.mxu0 0
        %292 = vmatpush2.bf16.msra.mxu0 0
        %293 = vmatprep.subr.bf16.mxu0 0
        %294 = vmatpush2.bf16.msra.mxu0 0
        %295 = vmatprep.subr.bf16.mxu0 0
        %296 = vmatpush2.bf16.msra.mxu0 0
        %297 = vmatprep.subr.bf16.mxu0 0
        %298 = vmatpush2.bf16.msra.mxu0 0
        %299 = vmatprep.subr.bf16.mxu0 0
        %300 = vmatpush2.bf16.msra.mxu0 0
        %301 = vmatprep.subr.bf16.mxu0 0
        %302 = vmatpush2.bf16.msra.mxu0 0
        %303 = vmatprep.subr.bf16.mxu0 0
        %304 = vmatpush2.bf16.msra.mxu0 0
        %305 = vmatprep.mubr.bf16.mxu0 0
        %306 = vmatmul.mubr.bf16.gmra.mxu0 %v204
        %v307 = vpop.f32.mrf.mxu0
        %v308 = vadd.f32 0.0, %v307
        %v309 = vpop.f32.mrf.mxu0
        %v310 = vpop.f32.mrf.mxu0
        %v311 = vpop.f32.mrf.mxu0
        %312 = vdwg.mxu0
        %v313 = vadd.f32 %v203, %v308
        %314 = vst [vmem:[%s188] sm:$0xff] %v313
        %s315 = sand.u32 %s89, 1
        %s316 = scalar_lea.sflag [#allocation4], %s315
        %s317 = sand.u32 %s89, 1
        %s318 = smul.addr %s317, 8
        %s319 = scalar_lea.vmem [#allocation7], %s318
        // Predicated region
        $region41: #{tpu_custom_call.1} parent=27 // pred_check
          %p320 = pneg %p99
        $region42: #{tpu_custom_call.1} parent=27 // pred_check_branch
          %322 = sbr.rel (%p320) target = $region44
        $region43: #{tpu_custom_call.1} parent=27 // pred_region
          %s324 = ssub.s32 128, 128
          %325 = vsyncadd %s316, %s324
          %s326 = smul.addr %s24, 128
          %s327 = scalar_lea.hbm %s2, %s326
          %s329 = sshll.u32 %s319, 4
          %s330 = int_to_ptr.vmem [resolvable:$true] %s329
          %332 = dma.vmem_to_hbm [thread:$0]  %s330, 128, %s327, %s316
        $region44: #{tpu_custom_call.1} parent=27 // pred_fallthru
          _
      $region28: #{tpu_custom_call.1} parent=5 // pred_fallthru
        _
      %p333 = scmp.le.s32.totalorder 2, %s15
      // Predicated region
      $region45: #{tpu_custom_call.1} parent=5 // pred_check
        %p334 = pneg %p333
      $region46: #{tpu_custom_call.1} parent=5 // pred_check_branch
        %336 = sbr.rel (%p334) target = $region48
      $region47: #{tpu_custom_call.1} parent=5 // pred_region
        %s337 = ssub.s32 %s15, 2
        // Predicated region
        $region49: #{tpu_custom_call.1} parent=47 // pred_check
          %p338 = pneg %p105
        $region50: #{tpu_custom_call.1} parent=47 // pred_check_branch
          %340 = sbr.rel (%p338) target = $region52
        $region51: #{tpu_custom_call.1} parent=47 // pred_region
          %s341 = sand.u32 %s90, 1
          %s342 = scalar_lea.sflag [#allocation4], %s341
          %s343 = sand.u32 %s90, 1
          %s344 = smul.addr %s343, 8
          %s345 = scalar_lea.vmem [#allocation7], %s344
          %346 = dma.done %s342, 128
        $region52: #{tpu_custom_call.1} parent=47 // pred_fallthru
          _
      $region48: #{tpu_custom_call.1} parent=5 // pred_fallthru
        _
    $region6: #{tpu_custom_call.1} parent=1 // loop_footer
      %s19 = sadd.s32 1, %s15
    $region7: #{tpu_custom_call.1} parent=1 // loop_footer_branch
      %14 = sbr.rel target = $region3
    $region8: #{tpu_custom_call.1} parent=1 // loop_exit
      _
    %347 = vsyncpa [#allocation3], 1
    %s348 = scalar_lea.sflag [#allocation3], 1
    %349 = vsyncpa %s348, 1
    %350 = vsyncpa [#allocation6], 1
    %351 = vsyncpa [#allocation4], 1
    %s352 = scalar_lea.sflag [#allocation4], 1
    %353 = vsyncpa %s352, 1

</llo_original>
